<compile_context>
chip_gen: v6e
topology: v6e:2x2x1
jax: 0.10.0
libtpu: 0.0.40
codegen_flags: <defaults>
</compile_context>

<pallas_src>
from math import sqrt

import jax
import jax.numpy as jnp
from jax import lax
from jax.experimental import pallas as pl
from jax.experimental.pallas import tpu as pltpu

BN_EPS = 1e-5


def _round_up(v: int, m: int) -> int:
    return (v + m - 1) // m * m


def _matvec_stats_kernel(w_ref, xt_ref, y_ref, sum_ref, sq_ref):
    """Phase 1: y = w @ x^T per N-tile (lane-dense) + running sum / sum-of-squares."""
    @pl.when(pl.program_id(0) == 0)
    def _():
        sum_ref[...] = jnp.zeros_like(sum_ref)
        sq_ref[...] = jnp.zeros_like(sq_ref)

    # (1, D) @ (D, Tn) -> (1, Tn): batch on the lane axis, unmasked stores.
    y = jnp.dot(w_ref[...], xt_ref[...], preferred_element_type=jnp.float32)
    y_ref[...] = y

    # Single-pass batch statistics (E[y], E[y^2]) accumulated across tiles.
    # (Zero-padded batch columns contribute exactly 0 because there is no bias.)
    sum_ref[...] += jnp.sum(y, axis=1, keepdims=True)
    sq_ref[...] += jnp.sum(y * y, axis=1, keepdims=True)


def _bn_apply_kernel(scale_ref, shift_ref, y_ref, o_ref):
    """Phase 2: fused BatchNorm affine o = y * scale + shift (scalars from SMEM)."""
    o_ref[...] = y_ref[...] * scale_ref[0] + shift_ref[0]


def mlp_forward(x, w, gamma, beta, b=None, *, block_n=1024, eps=BN_EPS):
    """x: (N, D) f32; w: torch Linear weight (1, D); gamma/beta: (1,) BN affine.

    b (Linear bias) is accepted for API compatibility but intentionally unused:
    it is cancelled exactly by the BatchNorm mean subtraction.
    Returns (N, 1) f32, matching the PyTorch module output.
    """
    del b  # mathematically a no-op under BatchNorm
    N, D = x.shape
    x = jnp.asarray(x, jnp.float32)
    w_row = jnp.asarray(w, jnp.float32).reshape(1, D)
    gamma = jnp.asarray(gamma, jnp.float32).reshape(())
    beta = jnp.asarray(beta, jnp.float32).reshape(())

    # Put the batch on the lane axis. NOTE: for large workloads, supply x already
    # transposed as (D, N) to avoid this extra XLA pass over x.
    x_t = x.T  # (D, N)

    # Tile N; keep the 2x double-buffered (D, Tn) f32 input tiles well inside the
    # v7x budget (64 MiB physical / 32 MiB scoped VMEM) — use ~8 MiB for the stream.
    vmem_budget = 8 * 1024 * 1024
    tn_cap = max(128, (vmem_budget // (2 * 4 * D)) // 128 * 128)
    tn = min(block_n, tn_cap, _round_up(N, 128))
    n_pad = _round_up(N, tn)
    if n_pad != N:
        # Zero padding is exact for the stats (no bias => padded y == 0 contributes
        # nothing to sum / sumsq); we divide by the true N below.
        x_t = jnp.pad(x_t, ((0, 0), (0, n_pad - N)))
    nt = n_pad // tn

    # ---- Phase 1: streamed matvec + global-stat accumulation ------------------
    y, y_sum, y_sq = pl.pallas_call(
        _matvec_stats_kernel,
        out_shape=(
            jax.ShapeDtypeStruct((1, n_pad), jnp.float32),  # un-normalized y (lane-dense)
            jax.ShapeDtypeStruct((1, 1), jnp.float32),      # sum(y)
            jax.ShapeDtypeStruct((1, 1), jnp.float32),      # sum(y*y)
        ),
        grid=(nt,),
        in_specs=[
            pl.BlockSpec((1, D), lambda i: (0, 0)),   # w row, VMEM-resident
            pl.BlockSpec((D, tn), lambda i: (0, i)),  # streamed x^T tile
        ],
        out_specs=(
            pl.BlockSpec((1, tn), lambda i: (0, i)),
            pl.BlockSpec((1, 1), lambda i: (0, 0)),   # accumulator (resident)
            pl.BlockSpec((1, 1), lambda i: (0, 0)),   # accumulator (resident)
        ),
        compiler_params=pltpu.CompilerParams(
            dimension_semantics=("arbitrary",)),      # stats accumulate over this axis
    )(w_row, x_t)

    # ---- Fold BN into one scale/shift (biased variance, torch training math) --
    inv_n = 1.0 / N
    mean = y_sum[0, 0] * inv_n
    var = y_sq[0, 0] * inv_n - mean * mean
    scale = gamma * lax.rsqrt(var + eps)
    shift = beta - mean * scale
    scale = scale.reshape(1)
    shift = shift.reshape(1)

    # ---- Phase 2: normalize (embarrassingly parallel over N; v7x gets 2 TCs) --
    z = pl.pallas_call(
        _bn_apply_kernel,
        out_shape=jax.ShapeDtypeStruct((1, n_pad), jnp.float32),
        grid=(nt,),
        in_specs=[
            pl.BlockSpec(memory_space=pltpu.MemorySpace.SMEM),  # scale (scalar)
            pl.BlockSpec(memory_space=pltpu.MemorySpace.SMEM),  # shift (scalar)
            pl.BlockSpec((1, tn), lambda i: (0, i)),
        ],
        out_specs=pl.BlockSpec((1, tn), lambda i: (0, i)),
        compiler_params=pltpu.CompilerParams(
            dimension_semantics=("parallel",)),
    )(scale, shift, y)

    # Drop padding and hand back the PyTorch-shaped (N, 1) result.
    return z[0, :N].reshape(N, 1)


if __name__ == "__main__":
    key = jax.random.PRNGKey(0)
    N, node1 = 8, 32  # batch=8, in-features(node1)=32, out_features=1

    kx, kw, kb = jax.random.split(key, 3)
    x = jax.random.normal(kx, (N, node1), dtype=jnp.float32)

    # Deterministic "nn.Linear(node1, 1)" params (uniform in +-1/sqrt(node1)).
    bound = 1.0 / sqrt(node1)
    w = jax.random.uniform(kw, (1, node1), jnp.float32, -bound, bound)  # torch layout (out, in)
    b = jax.random.uniform(kb, (1,), jnp.float32, -bound, bound)

    # BatchNorm1d(1) affine params at default init.
    gamma = jnp.ones((1,), jnp.float32)
    beta = jnp.zeros((1,), jnp.float32)

    out = mlp_forward(x, w, gamma, beta, b=b)
    out = jax.block_until_ready(out)

    # Pure-JAX reference of the original module math (bias included to show it cancels).
    y_ref = x @ w.T + b                                   # (N, 1)
    m = y_ref.mean(axis=0, keepdims=True)
    v = ((y_ref - m) ** 2).mean(axis=0, keepdims=True)    # biased var, torch training BN
    ref = (y_ref - m) / jnp.sqrt(v + BN_EPS) * gamma + beta

    assert out.shape == (N, 1)
    assert jnp.allclose(out, ref, atol=1e-4, rtol=1e-4), (out, ref)

    print("KERNEL_OK")
</pallas_src>

<mosaic_0001>
module attributes {stable_mosaic.version = 11 : i64} {
  func.func @_matvec_stats_kernel(%arg0: i32, %arg1: memref<1x32xf32, #tpu.memory_space<vmem>>, %arg2: memref<32x128xf32, #tpu.memory_space<vmem>>, %arg3: memref<1x128xf32, #tpu.memory_space<vmem>>, %arg4: memref<1x1xf32, #tpu.memory_space<vmem>>, %arg5: memref<1x1xf32, #tpu.memory_space<vmem>>) attributes {dimension_semantics = [#tpu.dimension_semantics<arbitrary>], iteration_bounds = array<i64: 1>, scalar_prefetch = 0 : i64, scratch_operands = 0 : i64, tpu.core_type = #tpu.core_type<tc>, window_params = [{pipeline_mode = #tpu.pipeline_mode<synchronous>, transform_indices = @transform_0, window_bounds = array<i64: 1, 32>}, {transform_indices = @transform_1, window_bounds = array<i64: 32, 128>}, {transform_indices = @transform_2, window_bounds = array<i64: 1, 128>}, {pipeline_mode = #tpu.pipeline_mode<synchronous>, transform_indices = @transform_3, window_bounds = array<i64: 1, 1>}, {pipeline_mode = #tpu.pipeline_mode<synchronous>, transform_indices = @transform_4, window_bounds = array<i64: 1, 1>}]} {
    %c0_i32 = arith.constant 0 : i32
    %0 = arith.cmpi eq, %arg0, %c0_i32 : i32
    %1 = arith.extui %0 : i1 to i32
    %c0_i32_0 = arith.constant 0 : i32
    %2 = arith.cmpi ne, %1, %c0_i32_0 : i32
    scf.if %2 {
      %cst_16 = arith.constant 0.000000e+00 : f32
      %18 = vector.broadcast %cst_16 : f32 to vector<1x1xf32>
      %c0_17 = arith.constant 0 : index
      %c0_18 = arith.constant 0 : index
      %19 = vector.load %arg4[%c0_17, %c0_18] : memref<1x1xf32, #tpu.memory_space<vmem>>, vector<1x1xf32>
      tpu.vector_store %arg4[%c0_17, %c0_18], %18 {strides = array<i32>} : memref<1x1xf32, #tpu.memory_space<vmem>>, vector<1x1xf32>,
      %cst_19 = arith.constant 0.000000e+00 : f32
      %20 = vector.broadcast %cst_19 : f32 to vector<1x1xf32>
      %c0_20 = arith.constant 0 : index
      %c0_21 = arith.constant 0 : index
      %21 = vector.load %arg5[%c0_20, %c0_21] : memref<1x1xf32, #tpu.memory_space<vmem>>, vector<1x1xf32>
      tpu.vector_store %arg5[%c0_20, %c0_21], %20 {strides = array<i32>} : memref<1x1xf32, #tpu.memory_space<vmem>>, vector<1x1xf32>,
    } else {
    }
    %c0 = arith.constant 0 : index
    %c0_1 = arith.constant 0 : index
    %3 = vector.load %arg1[%c0, %c0_1] : memref<1x32xf32, #tpu.memory_space<vmem>>, vector<1x32xf32>
    %c0_2 = arith.constant 0 : index
    %c0_3 = arith.constant 0 : index
    %4 = vector.load %arg2[%c0_2, %c0_3] : memref<32x128xf32, #tpu.memory_space<vmem>>, vector<32x128xf32>
    %cst = arith.constant dense<0.000000e+00> : vector<1x128xf32>
    %5 = tpu.matmul %3, %4, %cst {dimension_numbers = #tpu.dot_dimension_numbers<[1], [0], [0], [1], [0, 0, 1, 1], [], []>} : vector<1x32xf32>, vector<32x128xf32>, vector<1x128xf32> -> vector<1x128xf32>
    %c0_4 = arith.constant 0 : index
    %c0_5 = arith.constant 0 : index
    %6 = vector.load %arg3[%c0_4, %c0_5] : memref<1x128xf32, #tpu.memory_space<vmem>>, vector<1x128xf32>
    tpu.vector_store %arg3[%c0_4, %c0_5], %5 {strides = array<i32>} : memref<1x128xf32, #tpu.memory_space<vmem>>, vector<1x128xf32>,
    %c0_6 = arith.constant 0 : index
    %c0_7 = arith.constant 0 : index
    %7 = vector.load %arg4[%c0_6, %c0_7] : memref<1x1xf32, #tpu.memory_space<vmem>>, vector<1x1xf32>
    %cst_8 = arith.constant dense<0.000000e+00> : vector<1xf32>
    %8 = vector.multi_reduction <add>, %5, %cst_8 [1] : vector<1x128xf32> to vector<1xf32>
    %9 = vector.shape_cast %8 : vector<1xf32> to vector<1x1xf32>
    %10 = arith.addf %7, %9 : vector<1x1xf32>
    %c0_9 = arith.constant 0 : index
    %c0_10 = arith.constant 0 : index
    %11 = vector.load %arg4[%c0_9, %c0_10] : memref<1x1xf32, #tpu.memory_space<vmem>>, vector<1x1xf32>
    tpu.vector_store %arg4[%c0_9, %c0_10], %10 {strides = array<i32>} : memref<1x1xf32, #tpu.memory_space<vmem>>, vector<1x1xf32>,
    %c0_11 = arith.constant 0 : index
    %c0_12 = arith.constant 0 : index
    %12 = vector.load %arg5[%c0_11, %c0_12] : memref<1x1xf32, #tpu.memory_space<vmem>>, vector<1x1xf32>
    %13 = arith.mulf %5, %5 : vector<1x128xf32>
    %cst_13 = arith.constant dense<0.000000e+00> : vector<1xf32>
    %14 = vector.multi_reduction <add>, %13, %cst_13 [1] : vector<1x128xf32> to vector<1xf32>
    %15 = vector.shape_cast %14 : vector<1xf32> to vector<1x1xf32>
    %16 = arith.addf %12, %15 : vector<1x1xf32>
    %c0_14 = arith.constant 0 : index
    %c0_15 = arith.constant 0 : index
    %17 = vector.load %arg5[%c0_14, %c0_15] : memref<1x1xf32, #tpu.memory_space<vmem>>, vector<1x1xf32>
    tpu.vector_store %arg5[%c0_14, %c0_15], %16 {strides = array<i32>} : memref<1x1xf32, #tpu.memory_space<vmem>>, vector<1x1xf32>,
    return
  }
  func.func @transform_0(%arg0: i32) -> (i32, i32) {
    %c0_i32 = arith.constant 0 : i32
    %c0_i32_0 = arith.constant 0 : i32
    %c0_i32_1 = arith.constant 0 : i32
    return %c0_i32, %c0_i32_0 : i32, i32
  }
  func.func @transform_1(%arg0: i32) -> (i32, i32) {
    %c0_i32 = arith.constant 0 : i32
    %c0_i32_0 = arith.constant 0 : i32
    return %c0_i32, %arg0 : i32, i32
  }
  func.func @transform_2(%arg0: i32) -> (i32, i32) {
    %c0_i32 = arith.constant 0 : i32
    %c0_i32_0 = arith.constant 0 : i32
    return %c0_i32, %arg0 : i32, i32
  }
  func.func @transform_3(%arg0: i32) -> (i32, i32) {
    %c0_i32 = arith.constant 0 : i32
    %c0_i32_0 = arith.constant 0 : i32
    %c0_i32_1 = arith.constant 0 : i32
    return %c0_i32, %c0_i32_0 : i32, i32
  }
  func.func @transform_4(%arg0: i32) -> (i32, i32) {
    %c0_i32 = arith.constant 0 : i32
    %c0_i32_0 = arith.constant 0 : i32
    %c0_i32_1 = arith.constant 0 : i32
    return %c0_i32, %c0_i32_0 : i32, i32
  }
}

</mosaic_0001>

<llo_original>
// kernel: tpu_custom_call.1
$region0: #{tpu_custom_call.1}
  #allocation0 [shape = 'u32[]', space=smem, size = 0x4, offset = 0x4, fixed_abs, tag = 'smem constant byte address 0x4 - core index']
  #allocation1 [shape = 'u32[144,128]{1,0:T(1,128)}', space=vmem, size = 0x12000, scoped, tag = 'internal scratch']
  %s0 = inlined_call_operand.hbm [shape: f32[1,32], index: 0, kind: input, shape index: {}]
  %s1 = inlined_call_operand.hbm [shape: f32[32,128], index: 1, kind: input, shape index: {}]
  %s2 = inlined_call_operand.hbm [shape: f32[1,128], index: 2, kind: output, shape index: {0}]
  %s3 = inlined_call_operand.hbm [shape: f32[1,1], index: 3, kind: output, shape index: {1}]
  %s4 = inlined_call_operand.hbm [shape: f32[1,1], index: 4, kind: output, shape index: {2}]
  %5 = xla_tuple %s2, %s3, %s4
  %s6 = sld [smem:[#allocation0]]
  $region46: #{tpu_custom_call.1} parent=0
    _
  %s8 = ssub.s32 1, %s6
  %s9 = scalar_select 0, %s8, %s6
  $region1: #{tpu_custom_call.1} parent=0
    #allocation2 [shape = 'u8[512]{0}', space=vmem, size = 0x400, scoped, tag = 'input window, operand 0, single buffered']
    #allocation3 [shape = 's32[1]{0}', space=sflag, size = 0x4, scoped, tag = 'scoped memory for tpu_custom_call.1']
    #allocation4 [shape = 's32[1]{0}', space=sflag, size = 0x4, scoped, tag = 'scoped memory for tpu_custom_call.1']
    #allocation5 [shape = 'u8[16384]{0}', space=vmem, size = 0x4000, scoped, tag = 'input window, operand 1, single buffered']
    #allocation6 [shape = 's32[1]{0}', space=sflag, size = 0x4, scoped, tag = 'scoped memory for tpu_custom_call.1']
    #allocation7 [shape = 'u8[512]{0}', space=vmem, size = 0x400, scoped, tag = 'output window, operand 0, single buffered']
    #allocation8 [shape = 'u8[512]{0}', space=vmem, size = 0x400, scoped, tag = 'output window, operand 1, single buffered']
    #allocation9 [shape = 's32[1]{0}', space=sflag, size = 0x4, scoped, tag = 'scoped memory for tpu_custom_call.1']
    #allocation10 [shape = 'u8[512]{0}', space=vmem, size = 0x400, scoped, tag = 'output window, operand 2, single buffered']
    %10 = vsyncpa [#allocation3], 0
    %11 = vsyncpa [#allocation6], 0
    %12 = vsyncpa [#allocation4], 0
    %13 = vsyncpa [#allocation9], 0
    // Predicated region
    $region2: #{tpu_custom_call.1} parent=1 // pred_check
      _
    $region3: #{tpu_custom_call.1} parent=1 // pred_check_branch
      %15 = sbr.rel (0) target = $region5
    $region4: #{tpu_custom_call.1} parent=1 // pred_region
      %s17 = ssub.s32 16, 16
      %18 = vsyncadd [#allocation3], %s17
      %s20 = sshll.u32 [#allocation2], 4
      %s21 = int_to_ptr.vmem [resolvable:$true] %s20
      %23 = dma.hbm_to_vmem [thread:$0]  %s0, 16, %s21, [#allocation3]
    $region5: #{tpu_custom_call.1} parent=1 // pred_fallthru
      _
    // Predicated region
    $region6: #{tpu_custom_call.1} parent=1 // pred_check
      _
    $region7: #{tpu_custom_call.1} parent=1 // pred_check_branch
      %25 = sbr.rel (0) target = $region9
    $region8: #{tpu_custom_call.1} parent=1 // pred_region
      %s27 = ssub.s32 512, 512
      %28 = vsyncadd [#allocation6], %s27
      %s29 = sshll.u32 [#allocation5], 4
      %s30 = int_to_ptr.vmem [resolvable:$true] %s29
      %35 = dma.hbm_to_vmem [thread:$0]  %s1, 512, %s30, [#allocation6], 128, 128, 8
    $region9: #{tpu_custom_call.1} parent=1 // pred_fallthru
      _
    // Predicated region
    $region10: #{tpu_custom_call.1} parent=1 // pred_check
      _
    $region11: #{tpu_custom_call.1} parent=1 // pred_check_branch
      %37 = sbr.rel (0) target = $region13
    $region12: #{tpu_custom_call.1} parent=1 // pred_region
      %38 = dma.done [#allocation3], 16
    $region13: #{tpu_custom_call.1} parent=1 // pred_fallthru
      _
    // Predicated region
    $region14: #{tpu_custom_call.1} parent=1 // pred_check
      _
    $region15: #{tpu_custom_call.1} parent=1 // pred_check_branch
      %40 = sbr.rel (0) target = $region17
    $region16: #{tpu_custom_call.1} parent=1 // pred_region
      %41 = dma.done [#allocation6], 512
    $region17: #{tpu_custom_call.1} parent=1 // pred_fallthru
      _
    %p42 = scmp.eq.s32.totalorder 0, 0
    // Predicated region
    $region18: #{tpu_custom_call.1} parent=1 // pred_check
      %p43 = pneg %p42
    $region19: #{tpu_custom_call.1} parent=1 // pred_check_branch
      %45 = sbr.rel (%p43) target = $region21
    $region20: #{tpu_custom_call.1} parent=1 // pred_region
      %vm46 = vcmask 0
      %47 = vst.msk [vmem:[#allocation8] sm:$0x1] %vm46, 0.0
      %48 = vst.msk [vmem:[#allocation10] sm:$0x1] %vm46, 0.0
    $region21: #{tpu_custom_call.1} parent=1 // pred_fallthru
      _
    %v49 = vld [vmem:[#allocation2] sm:$0x1]
    %v50 = vld [vmem:[#allocation5] sm:$0xff]
    %v51 = vld [vmem:[#allocation5 + $0x8] sm:$0xff]
    %v52 = vld [vmem:[#allocation5 + $0x10] sm:$0xff]
    %v53 = vld [vmem:[#allocation5 + $0x18] sm:$0xff]
    %vm54 = vcmask 261120
    %v56 = vsel %vm54, %v49, 0
    %58 = vmatprep.subr.mxu0 0.0
    %59 = vmatpush1.msra.mxu0 0.0
    %60 = vmatprep.subr.mxu0 0.0
    %61 = vmatpush1.msra.mxu0 0.0
    %62 = vmatprep.subr.mxu0 0.0
    %63 = vmatpush1.msra.mxu0 0.0
    %64 = vmatprep.subr.mxu0 0.0
    %65 = vmatpush1.msra.mxu0 0.0
    %66 = vmatprep.subr.mxu0 0.0
    %67 = vmatpush1.msra.mxu0 0.0
    %68 = vmatprep.subr.mxu0 0.0
    %69 = vmatpush1.msra.mxu0 0.0
    %70 = vmatprep.subr.mxu0 0.0
    %71 = vmatpush1.msra.mxu0 0.0
    %72 = vmatprep.subr.mxu0 0.0
    %73 = vmatpush1.msra.mxu0 0.0
    %74 = vmatprep.subr.mxu0 0.0
    %75 = vmatpush1.msra.mxu0 0.0
    %76 = vmatprep.subr.mxu0 0.0
    %77 = vmatpush1.msra.mxu0 0.0
    %78 = vmatprep.subr.mxu0 0.0
    %79 = vmatpush1.msra.mxu0 0.0
    %80 = vmatprep.subr.mxu0 0.0
    %81 = vmatpush1.msra.mxu0 0.0
    %82 = vmatprep.subr.mxu0 0.0
    %83 = vmatpush1.msra.mxu0 %v53
    %84 = vmatprep.subr.mxu0 0.0
    %85 = vmatpush1.msra.mxu0 %v52
    %86 = vmatprep.subr.mxu0 0.0
    %87 = vmatpush1.msra.mxu0 %v51
    %88 = vmatprep.subr.mxu0 0.0
    %89 = vmatpush1.msra.mxu0 %v50
    %90 = vmatprep.subr.mxu0 0.0
    %91 = vmatpush2.msra.mxu0 0.0
    %92 = vmatprep.subr.mxu0 0.0
    %93 = vmatpush2.msra.mxu0 0.0
    %94 = vmatprep.subr.mxu0 0.0
    %95 = vmatpush2.msra.mxu0 0.0
    %96 = vmatprep.subr.mxu0 0.0
    %97 = vmatpush2.msra.mxu0 0.0
    %98 = vmatprep.subr.mxu0 0.0
    %99 = vmatpush2.msra.mxu0 0.0
    %100 = vmatprep.subr.mxu0 0.0
    %101 = vmatpush2.msra.mxu0 0.0
    %102 = vmatprep.subr.mxu0 0.0
    %103 = vmatpush2.msra.mxu0 0.0
    %104 = vmatprep.subr.mxu0 0.0
    %105 = vmatpush2.msra.mxu0 0.0
    %106 = vmatprep.subr.mxu0 0.0
    %107 = vmatpush2.msra.mxu0 0.0
    %108 = vmatprep.subr.mxu0 0.0
    %109 = vmatpush2.msra.mxu0 0.0
    %110 = vmatprep.subr.mxu0 0.0
    %111 = vmatpush2.msra.mxu0 0.0
    %112 = vmatprep.subr.mxu0 0.0
    %113 = vmatpush2.msra.mxu0 0.0
    %114 = vmatprep.subr.mxu0 0.0
    %115 = vmatpush2.msra.mxu0 0.0
    %116 = vmatprep.subr.mxu0 0.0
    %117 = vmatpush2.msra.mxu0 0.0
    %118 = vmatprep.subr.mxu0 0.0
    %119 = vmatpush2.msra.mxu0 0.0
    %120 = vmatprep.subr.mxu0 0.0
    %121 = vmatpush2.msra.mxu0 0.0
    %122 = vmatprep.mubr.f32.mxu0 0.0
    %123 = vmatmul.mubr.f32.gmra.mxu0 %v56
    %v124 = vpop.f32.mrf.mxu0
    %v125 = vadd.f32 0.0, %v124
    %v126 = vpop.f32.mrf.mxu0
    %127 = vdwg.mxu0
    %128 = vst [vmem:[#allocation7] sm:$0x1] %v125
    %v129 = vld [vmem:[#allocation8] sm:$0x1]
    %vm130 = vcmask 1040384
    %v131 = vsel %vm130, %v125, 0.0
    %132 = vadd.xlane.f32.xlu0 %v131
    %v133 = vpop.xlane.xlu0 %132
    %v134 = vadd.f32 %v129, %v133
    %vm135 = vcmask 0
    %136 = vst.msk [vmem:[#allocation8] sm:$0x1] %vm135, %v134
    %v137 = vld [vmem:[#allocation10] sm:$0x1]
    %v138 = vmul.f32 %v125, %v125
    %v139 = vsel %vm130, %v138, 0.0
    %140 = vadd.xlane.f32.xlu0 %v139
    %v141 = vpop.xlane.xlu0 %140
    %v142 = vadd.f32 %v137, %v141
    %143 = vst.msk [vmem:[#allocation10] sm:$0x1] %vm135, %v142
    // Predicated region
    $region22: #{tpu_custom_call.1} parent=1 // pred_check
      _
    $region23: #{tpu_custom_call.1} parent=1 // pred_check_branch
      %145 = sbr.rel (0) target = $region25
    $region24: #{tpu_custom_call.1} parent=1 // pred_region
      %s147 = ssub.s32 16, 16
      %148 = vsyncadd [#allocation4], %s147
      %s150 = sshll.u32 [#allocation7], 4
      %s151 = int_to_ptr.vmem [resolvable:$true] %s150
      %153 = dma.vmem_to_hbm [thread:$0]  %s151, 16, %s2, [#allocation4]
    $region25: #{tpu_custom_call.1} parent=1 // pred_fallthru
      _
    // Predicated region
    $region26: #{tpu_custom_call.1} parent=1 // pred_check
      _
    $region27: #{tpu_custom_call.1} parent=1 // pred_check_branch
      %155 = sbr.rel (0) target = $region29
    $region28: #{tpu_custom_call.1} parent=1 // pred_region
      %s157 = ssub.s32 16, 16
      %158 = vsyncadd [#allocation9], %s157
      %s160 = sshll.u32 [#allocation8], 4
      %s161 = int_to_ptr.vmem [resolvable:$true] %s160
      %163 = dma.vmem_to_hbm [thread:$0]  %s161, 16, %s3, [#allocation9]
    $region29: #{tpu_custom_call.1} parent=1 // pred_fallthru
      _
    // Predicated region
    $region30: #{tpu_custom_call.1} parent=1 // pred_check
      _
    $region31: #{tpu_custom_call.1} parent=1 // pred_check_branch
      %165 = sbr.rel (0) target = $region33
    $region32: #{tpu_custom_call.1} parent=1 // pred_region
      %s167 = ssub.s32 16, 16
      %168 = vsyncadd [#allocation9], %s167
      %s170 = sshll.u32 [#allocation10], 4
      %s171 = int_to_ptr.vmem [resolvable:$true] %s170
      %173 = dma.vmem_to_hbm [thread:$0]  %s171, 16, %s4, [#allocation9]
    $region33: #{tpu_custom_call.1} parent=1 // pred_fallthru
      _
    // Predicated region
    $region34: #{tpu_custom_call.1} parent=1 // pred_check
      _
    $region35: #{tpu_custom_call.1} parent=1 // pred_check_branch
      %175 = sbr.rel (0) target = $region37
    $region36: #{tpu_custom_call.1} parent=1 // pred_region
      %176 = dma.done [#allocation4], 16
    $region37: #{tpu_custom_call.1} parent=1 // pred_fallthru
      _
    // Predicated region
    $region38: #{tpu_custom_call.1} parent=1 // pred_check
      _
    $region39: #{tpu_custom_call.1} parent=1 // pred_check_branch
      %178 = sbr.rel (0) target = $region41
    $region40: #{tpu_custom_call.1} parent=1 // pred_region
      %179 = dma.done [#allocation9], 16
    $region41: #{tpu_custom_call.1} parent=1 // pred_fallthru
      _
    // Predicated region
    $region42: #{tpu_custom_call.1} parent=1 // pred_check
      _
    $region43: #{tpu_custom_call.1} parent=1 // pred_check_branch
      %181 = sbr.rel (0) target = $region45
    $region44: #{tpu_custom_call.1} parent=1 // pred_region
      %182 = dma.done [#allocation9], 16
    $region45: #{tpu_custom_call.1} parent=1 // pred_fallthru
      _
    %183 = vsyncpa [#allocation3], 1
    %184 = vsyncpa [#allocation6], 1
    %185 = vsyncpa [#allocation4], 1
    %186 = vsyncpa [#allocation9], 1

</llo_original>
